<compile_context>
chip_gen: v7x
topology: tpu7x:2x2x1
jax: 0.10.0
libtpu: 0.0.40
codegen_flags: <defaults>
</compile_context>

<pallas_src>
import functools

import jax
import jax.numpy as jnp
from jax.experimental import pallas as pl
from jax.experimental.pallas import tpu as pltpu


def _conv1d_kernel(x_ref, wt_ref, b_ref, o_ref):
    # x_ref  : (tm, nx)  tile of flattened input rows
    # wt_ref : (nx, tn)  pre-transposed weight tile (contraction along axis 0)
    # b_ref  : (1,  tn)  bias tile, already float32
    # o_ref  : (tm, tn)
    acc = jnp.dot(x_ref[...], wt_ref[...], preferred_element_type=jnp.float32)
    o_ref[...] = (acc + b_ref[...]).astype(o_ref.dtype)


def _choose_tiles(m, nx, nf, itemsize, *, tm_target=512, tn_target=1024,
                  vmem_budget=24 * 1024 * 1024):
    """Pick (tm, tn) so double-buffered blocks fit a conservative VMEM budget
    (safe for v7x's 64 MiB as well as v5e/v6e)."""
    # Lane (nf) tile: full dim if small, else a multiple of 128.
    tn = nf if nf <= tn_target else tn_target
    # Row tile: full dim if small, else the target (multiple of 8 -> ragged tail OK).
    tm = m if m <= tm_target else tm_target

    def vmem_bytes(tm_, tn_):
        # double-buffered x / w / out blocks + bias row
        return 2 * itemsize * (tm_ * nx + nx * tn_ + tm_ * tn_) + 4 * tn_

    while tm > 8 and vmem_bytes(tm, tn) > vmem_budget:
        tm = max(8, (tm // 2) // 8 * 8)
    return tm, tn


@functools.partial(jax.jit, static_argnames=("tm", "tn"))
def conv1d(x, w, b, *, tm=None, tn=None):
    """y = x @ w.T + b over the last axis of x.

    x : (..., nx), w : (nf, nx), b : (nf,)  ->  y : (..., nf)
    """
    nf, nx = w.shape
    orig_shape = x.shape
    x2 = x.reshape(-1, nx)
    m = x2.shape[0]

    tm_auto, tn_auto = _choose_tiles(m, nx, nf, x2.dtype.itemsize)
    tm = tm_auto if tm is None else tm
    tn = tn_auto if tn is None else tn

    # One-time layout prep (outside the kernel, not per tile):
    wt = w.T                                   # (nx, nf): native MXU feed
    b2 = b.reshape(1, nf).astype(jnp.float32)  # bias in f32 once

    # Ragged last blocks are handled by Pallas (OOB reads unspecified, OOB
    # writes masked), so no jnp.pad of x and no output slice.
    grid = (pl.cdiv(m, tm), pl.cdiv(nf, tn))   # nf axis last -> x tile stays resident

    cost = pl.CostEstimate(
        flops=2 * m * nx * nf,
        transcendentals=0,
        bytes_accessed=int(x2.dtype.itemsize * (m * nx + nx * nf + m * nf) + 4 * nf),
    )

    out = pl.pallas_call(
        _conv1d_kernel,
        out_shape=jax.ShapeDtypeStruct((m, nf), x.dtype),
        grid_spec=pltpu.PrefetchScalarGridSpec(
            num_scalar_prefetch=0,
            grid=grid,
            in_specs=[
                pl.BlockSpec((tm, nx), lambda i, j: (i, 0)),  # x row tile
                pl.BlockSpec((nx, tn), lambda i, j: (0, j)),  # w^T column tile
                pl.BlockSpec((1, tn), lambda i, j: (0, j)),   # bias tile
            ],
            out_specs=pl.BlockSpec((tm, tn), lambda i, j: (i, j)),
        ),
        compiler_params=pltpu.CompilerParams(
            dimension_semantics=("parallel", "parallel"),
        ),
        cost_estimate=cost,
    )(x2, wt, b2)

    return out.reshape(orig_shape[:-1] + (nf,))


def conv1d_ref(x, w, b):
    return jnp.einsum("...k,nk->...n", x, w) + b


if __name__ == "__main__":
    # Module config: Conv1D(nf, rf=1, nx)
    nf, rf, nx = 64, 1, 32
    assert rf == 1  # TODO(synk): rf != 1 raises NotImplementedError in PyTorch too.

    key = jax.random.PRNGKey(0)
    kx, kw, kx2, kb2 = jax.random.split(key, 4)

    # Deterministic parameter init mirroring nn.init.normal_(w, std=0.02), b = 0.
    w = (0.02 * jax.random.normal(kw, (nf, nx))).astype(jnp.float32)
    b = jnp.zeros((nf,), jnp.float32)

    # Small input: batch=2, seq=8, hidden=nx=32.
    x = jax.random.normal(kx, (2, 8, nx), dtype=jnp.float32)
    y = conv1d(x, w, b)
    jax.block_until_ready(y)
    y_ref = conv1d_ref(x, w, b)
    assert y.shape == (2, 8, nf), y.shape
    assert jnp.allclose(y, y_ref, atol=1e-5, rtol=1e-5), float(
        jnp.max(jnp.abs(y - y_ref))
    )

    # Exercise the large-tile / ragged-last-block path (m = 4*130 = 520 = 512 + 8)
    # with a non-zero bias.
    x_big = jax.random.normal(kx2, (4, 130, nx), dtype=jnp.float32)
    b_big = (0.1 * jax.random.normal(kb2, (nf,))).astype(jnp.float32)
    y_big = conv1d(x_big, w, b_big)
    jax.block_until_ready(y_big)
    y_big_ref = conv1d_ref(x_big, w, b_big)
    assert y_big.shape == (4, 130, nf), y_big.shape
    assert jnp.allclose(y_big, y_big_ref, atol=1e-5, rtol=1e-5), float(
        jnp.max(jnp.abs(y_big - y_big_ref))
    )

    print("KERNEL_OK")
</pallas_src>

<mosaic_0001>
module attributes {stable_mosaic.version = 11 : i64} {
  func.func @_conv1d_kernel(%arg0: i32, %arg1: i32, %arg2: memref<16x32xf32, #tpu.memory_space<vmem>>, %arg3: memref<32x64xf32, #tpu.memory_space<vmem>>, %arg4: memref<1x64xf32, #tpu.memory_space<vmem>>, %arg5: memref<16x64xf32, #tpu.memory_space<vmem>>) attributes {dimension_semantics = [#tpu.dimension_semantics<parallel>, #tpu.dimension_semantics<parallel>], iteration_bounds = array<i64: 1, 1>, scalar_prefetch = 0 : i64, scratch_operands = 0 : i64, tpu.core_type = #tpu.core_type<tc>, window_params = [{transform_indices = @transform_0, window_bounds = array<i64: 16, 32>}, {transform_indices = @transform_1, window_bounds = array<i64: 32, 64>}, {transform_indices = @transform_2, window_bounds = array<i64: 1, 64>}, {transform_indices = @transform_3, window_bounds = array<i64: 16, 64>}]} {
    %c0 = arith.constant 0 : index
    %c0_0 = arith.constant 0 : index
    %0 = vector.load %arg2[%c0, %c0_0] : memref<16x32xf32, #tpu.memory_space<vmem>>, vector<16x32xf32>
    %c0_1 = arith.constant 0 : index
    %c0_2 = arith.constant 0 : index
    %1 = vector.load %arg3[%c0_1, %c0_2] : memref<32x64xf32, #tpu.memory_space<vmem>>, vector<32x64xf32>
    %cst = arith.constant dense<0.000000e+00> : vector<16x64xf32>
    %2 = tpu.matmul %0, %1, %cst {dimension_numbers = #tpu.dot_dimension_numbers<[1], [0], [0], [1], [0, 0, 1, 1], [], []>} : vector<16x32xf32>, vector<32x64xf32>, vector<16x64xf32> -> vector<16x64xf32>
    %c0_3 = arith.constant 0 : index
    %c0_4 = arith.constant 0 : index
    %3 = vector.load %arg4[%c0_3, %c0_4] : memref<1x64xf32, #tpu.memory_space<vmem>>, vector<1x64xf32>
    %4 = vector.broadcast %3 : vector<1x64xf32> to vector<16x64xf32>
    %5 = arith.addf %2, %4 : vector<16x64xf32>
    %c0_5 = arith.constant 0 : index
    %c0_6 = arith.constant 0 : index
    %6 = vector.load %arg5[%c0_5, %c0_6] : memref<16x64xf32, #tpu.memory_space<vmem>>, vector<16x64xf32>
    tpu.vector_store %arg5[%c0_5, %c0_6], %5 {strides = array<i32>} : memref<16x64xf32, #tpu.memory_space<vmem>>, vector<16x64xf32>,
    return
  }
  func.func @transform_0(%arg0: i32, %arg1: i32) -> (i32, i32) {
    %c0_i32 = arith.constant 0 : i32
    %c0_i32_0 = arith.constant 0 : i32
    return %arg0, %c0_i32 : i32, i32
  }
  func.func @transform_1(%arg0: i32, %arg1: i32) -> (i32, i32) {
    %c0_i32 = arith.constant 0 : i32
    %c0_i32_0 = arith.constant 0 : i32
    return %c0_i32, %arg1 : i32, i32
  }
  func.func @transform_2(%arg0: i32, %arg1: i32) -> (i32, i32) {
    %c0_i32 = arith.constant 0 : i32
    %c0_i32_0 = arith.constant 0 : i32
    return %c0_i32, %arg1 : i32, i32
  }
  func.func @transform_3(%arg0: i32, %arg1: i32) -> (i32, i32) {
    %c0_i32 = arith.constant 0 : i32
    return %arg0, %arg1 : i32, i32
  }
}

</mosaic_0001>

<llo_original>
// kernel: conv1d.1
$region0: #{conv1d.1}
  #allocation0 [shape = 'u32[]', space=smem, size = 0x4, offset = 0x4, fixed_abs, tag = 'smem constant byte address 0x4 - core index']
  #allocation1 [shape = 'u32[144,128]{1,0:T(1,128)}', space=vmem, size = 0x12000, scoped, tag = 'internal scratch']
  %s0 = inlined_call_operand.hbm [shape: f32[16,32], index: 0, kind: input, shape index: {}]
  %s1 = inlined_call_operand.hbm [shape: f32[32,64], index: 1, kind: input, shape index: {}]
  %s2 = inlined_call_operand.vmem [shape: f32[1,64], index: 2, kind: input, shape index: {}]
  %s3 = inlined_call_operand.hbm [shape: f32[16,64], index: 3, kind: output, shape index: {}]
  %s4 = sld [smem:[#allocation0]]
  $region30: #{conv1d.1} parent=0
    _
  %s6 = ssub.s32 1, %s4
  %s7 = scalar_select 0, %s6, %s4
  $region1: #{conv1d.1} parent=0
    #allocation2 [shape = 'u8[8192]{0}', space=vmem, size = 0x2000, scoped, tag = 'input window, operand 0, single buffered']
    #allocation3 [shape = 's32[1]{0}', space=sflag, size = 0x4, scoped, tag = 'scoped memory for conv1d.1']
    #allocation4 [shape = 's32[1]{0}', space=sflag, size = 0x4, scoped, tag = 'scoped memory for conv1d.1']
    #allocation5 [shape = 'u8[16384]{0}', space=vmem, size = 0x4000, scoped, tag = 'input window, operand 1, single buffered']
    #allocation6 [shape = 's32[1]{0}', space=sflag, size = 0x4, scoped, tag = 'scoped memory for conv1d.1']
    #allocation7 [shape = 'u8[8192]{0}', space=vmem, size = 0x2000, scoped, tag = 'output window, operand 0, single buffered']
    %8 = vsyncpa [#allocation3], 0
    %9 = vsyncpa [#allocation6], 0
    %10 = vsyncpa [#allocation4], 0
    // Predicated region
    $region2: #{conv1d.1} parent=1 // pred_check
      _
    $region3: #{conv1d.1} parent=1 // pred_check_branch
      %12 = sbr.rel (0) target = $region5
    $region4: #{conv1d.1} parent=1 // pred_region
      %s14 = ssub.s32 256, 256
      %15 = vsyncadd [#allocation3], %s14
      %s16 = sshll.u32 [#allocation2], 4
      %s17 = int_to_ptr.vmem [resolvable:$true] %s16
      %22 = dma.hbm_to_vmem [thread:$0]  %s0, 256, %s17, [#allocation3], 128, 128, 8
    $region5: #{conv1d.1} parent=1 // pred_fallthru
      _
    // Predicated region
    $region6: #{conv1d.1} parent=1 // pred_check
      _
    $region7: #{conv1d.1} parent=1 // pred_check_branch
      %24 = sbr.rel (0) target = $region9
    $region8: #{conv1d.1} parent=1 // pred_region
      %s26 = ssub.s32 512, 512
      %27 = vsyncadd [#allocation6], %s26
      %s28 = sshll.u32 [#allocation5], 4
      %s29 = int_to_ptr.vmem [resolvable:$true] %s28
      %34 = dma.hbm_to_vmem [thread:$0]  %s1, 512, %s29, [#allocation6], 128, 128, 8
    $region9: #{conv1d.1} parent=1 // pred_fallthru
      _
    // Predicated region
    $region10: #{conv1d.1} parent=1 // pred_check
      _
    $region11: #{conv1d.1} parent=1 // pred_check_branch
      %36 = sbr.rel (0) target = $region13
    $region12: #{conv1d.1} parent=1 // pred_region
      _
    $region13: #{conv1d.1} parent=1 // pred_fallthru
      _
    // Predicated region
    $region14: #{conv1d.1} parent=1 // pred_check
      _
    $region15: #{conv1d.1} parent=1 // pred_check_branch
      %38 = sbr.rel (0) target = $region17
    $region16: #{conv1d.1} parent=1 // pred_region
      %39 = dma.done [#allocation3], 256
    $region17: #{conv1d.1} parent=1 // pred_fallthru
      _
    // Predicated region
    $region18: #{conv1d.1} parent=1 // pred_check
      _
    $region19: #{conv1d.1} parent=1 // pred_check_branch
      %41 = sbr.rel (0) target = $region21
    $region20: #{conv1d.1} parent=1 // pred_region
      %42 = dma.done [#allocation6], 512
    $region21: #{conv1d.1} parent=1 // pred_fallthru
      _
    %v43 = vld [vmem:[#allocation2] sm:$0xff]
    %v44 = vld [vmem:[#allocation2 + $0x8] sm:$0xff]
    %v45 = vld [vmem:[#allocation5] sm:$0xff]
    %v46 = vld [vmem:[#allocation5 + $0x8] sm:$0xff]
    %v47 = vld [vmem:[#allocation5 + $0x10] sm:$0xff]
    %v48 = vld [vmem:[#allocation5 + $0x18] sm:$0xff]
    %v49 = vld [vmem:[%s2] sm:$0x1]
    %v51 = vlaneseq
    %v52 = vshrl.u32 %v51, 7
    %v53 = vsub.s32 0, %v52
    %v54 = vrot.slane %v49, %v53
    %vm56 = vcmask 261120
    %v58 = vsel %vm56, %v43, 0
    %v61 = vsel %vm56, %v44, 0
    %63 = vmatprep.subr.mxu0 0.0
    %64 = vmatpush1.msra.mxu0 %v45
    %65 = vmatprep.subr.mxu0 0.0
    %66 = vmatpush1.msra.mxu0 %v46
    %67 = vmatprep.subr.mxu0 0.0
    %68 = vmatpush1.msra.mxu0 %v47
    %69 = vmatprep.subr.mxu0 0.0
    %70 = vmatpush1.msra.mxu0 %v48
    %71 = vmatprep.subr.mxu0 0.0
    %72 = vmatpush1.msra.mxu0 0.0
    %73 = vmatprep.subr.mxu0 0.0
    %74 = vmatpush1.msra.mxu0 0.0
    %75 = vmatprep.subr.mxu0 0.0
    %76 = vmatpush1.msra.mxu0 0.0
    %77 = vmatprep.subr.mxu0 0.0
    %78 = vmatpush1.msra.mxu0 0.0
    %79 = vmatprep.subr.mxu0 0.0
    %80 = vmatpush1.msra.mxu0 0.0
    %81 = vmatprep.subr.mxu0 0.0
    %82 = vmatpush1.msra.mxu0 0.0
    %83 = vmatprep.subr.mxu0 0.0
    %84 = vmatpush1.msra.mxu0 0.0
    %85 = vmatprep.subr.mxu0 0.0
    %86 = vmatpush1.msra.mxu0 0.0
    %87 = vmatprep.subr.mxu0 0.0
    %88 = vmatpush1.msra.mxu0 0.0
    %89 = vmatprep.subr.mxu0 0.0
    %90 = vmatpush1.msra.mxu0 0.0
    %91 = vmatprep.subr.mxu0 0.0
    %92 = vmatpush1.msra.mxu0 0.0
    %93 = vmatprep.subr.mxu0 0.0
    %94 = vmatpush1.msra.mxu0 0.0
    %95 = vmatprep.subr.mxu0 0.0
    %96 = vmatpush1.msra.mxu0 0.0
    %97 = vmatprep.subr.mxu0 0.0
    %98 = vmatpush1.msra.mxu0 0.0
    %99 = vmatprep.subr.mxu0 0.0
    %100 = vmatpush1.msra.mxu0 0.0
    %101 = vmatprep.subr.mxu0 0.0
    %102 = vmatpush1.msra.mxu0 0.0
    %103 = vmatprep.subr.mxu0 0.0
    %104 = vmatpush1.msra.mxu0 0.0
    %105 = vmatprep.subr.mxu0 0.0
    %106 = vmatpush1.msra.mxu0 0.0
    %107 = vmatprep.subr.mxu0 0.0
    %108 = vmatpush1.msra.mxu0 0.0
    %109 = vmatprep.subr.mxu0 0.0
    %110 = vmatpush1.msra.mxu0 0.0
    %111 = vmatprep.subr.mxu0 0.0
    %112 = vmatpush1.msra.mxu0 0.0
    %113 = vmatprep.subr.mxu0 0.0
    %114 = vmatpush1.msra.mxu0 0.0
    %115 = vmatprep.subr.mxu0 0.0
    %116 = vmatpush1.msra.mxu0 0.0
    %117 = vmatprep.subr.mxu0 0.0
    %118 = vmatpush1.msra.mxu0 0.0
    %119 = vmatprep.subr.mxu0 0.0
    %120 = vmatpush1.msra.mxu0 0.0
    %121 = vmatprep.subr.mxu0 0.0
    %122 = vmatpush1.msra.mxu0 0.0
    %123 = vmatprep.subr.mxu0 0.0
    %124 = vmatpush1.msra.mxu0 0.0
    %125 = vmatprep.subr.mxu0 0.0
    %126 = vmatpush1.msra.mxu0 0.0
    %127 = vmatprep.mubr.f32.mxu0 0.0
    %128 = vmatmul.mubr.f32.gmra.mrb[0].mxu0 %v58
    %v129 = vpop.f32.mrb[0].mxu0
    %v130 = vadd.f32 %v54, %v129
    %v131 = vpop.f32.mrb[0].mxu0
    %132 = vmatprep.mubr.f32.mxu0 0.0
    %133 = vmatmul.mubr.f32.gmra.mrb[0].mxu0 %v61
    %v134 = vpop.f32.mrb[0].mxu0
    %v135 = vadd.f32 %v54, %v134
    %v136 = vpop.f32.mrb[0].mxu0
    %137 = vdwg.mxu0
    %vm138 = vcmask 523264
    %139 = vst.msk [vmem:[#allocation7] sm:$0xff] %vm138, %v130
    %140 = vst.msk [vmem:[#allocation7 + $0x8] sm:$0xff] %vm138, %v135
    // Predicated region
    $region22: #{conv1d.1} parent=1 // pred_check
      _
    $region23: #{conv1d.1} parent=1 // pred_check_branch
      %142 = sbr.rel (0) target = $region25
    $region24: #{conv1d.1} parent=1 // pred_region
      %s144 = ssub.s32 256, 256
      %145 = vsyncadd [#allocation4], %s144
      %s146 = sshll.u32 [#allocation7], 4
      %s147 = int_to_ptr.vmem [resolvable:$true] %s146
      %152 = dma.vmem_to_hbm [thread:$0]  %s147, 256, %s3, [#allocation4], 128, 128, 8
    $region25: #{conv1d.1} parent=1 // pred_fallthru
      _
    // Predicated region
    $region26: #{conv1d.1} parent=1 // pred_check
      _
    $region27: #{conv1d.1} parent=1 // pred_check_branch
      %154 = sbr.rel (0) target = $region29
    $region28: #{conv1d.1} parent=1 // pred_region
      %155 = dma.done [#allocation4], 256
    $region29: #{conv1d.1} parent=1 // pred_fallthru
      _
    %156 = vsyncpa [#allocation3], 1
    %157 = vsyncpa [#allocation6], 1
    %158 = vsyncpa [#allocation4], 1

</llo_original>
